<compile_context>
chip_gen: v5e
topology: v5e:2x2
jax: 0.10.0
libtpu: 0.0.40
codegen_flags: <defaults>
</compile_context>

<pallas_src>
import functools

import jax
import jax.numpy as jnp
from jax.experimental import pallas as pl
from jax.experimental.pallas import tpu as pltpu

_LANE = 128
_SUBLANE = 8
_MAX_BLOCK_ROWS = 4096  # 4096 * 128 * 4B = 2 MiB per input per grid step


def _huber_partial_kernel(yp_ref, yt_ref, out_ref, *, clip_delta, valid_rows, apply_mask):
    # Load tiles in their native dtype; cast on the VPU.
    yp = yp_ref[...].astype(jnp.float32)
    yt = yt_ref[...].astype(jnp.float32)

    delta = jnp.float32(clip_delta)
    td_abs = jnp.abs(yt - yp)
    quadratic = jnp.minimum(td_abs, delta)
    linear = td_abs - quadratic
    loss = 0.5 * quadratic * quadratic + delta * linear

    if apply_mask:
        # Ragged last block: rows past `valid_rows` hold unspecified data.
        block_rows = yp_ref.shape[0]
        row_idx = (jax.lax.broadcasted_iota(jnp.int32, loss.shape, 0)
                   + pl.program_id(0) * block_rows)
        loss = jnp.where(row_idx < valid_rows, loss, jnp.float32(0.0))

    # (block_rows, 128) -> (block_rows//8, 8, 128) is tile-aligned; the axis-0
    # reduce is pure vreg adds (VPU), leaving the single cross-lane reduce to
    # the wrapper-side jnp.sum over the tiny partials array.
    partial = loss.reshape(-1, _SUBLANE, _LANE).sum(axis=0)
    out_ref[...] = partial[None]


def huber_loss(y_pred, y_true, clip_delta, *, max_block_rows=_MAX_BLOCK_ROWS):
    """Matches HuberLoss(clip_delta).forward(y_pred, y_true): scalar mean loss."""
    assert y_pred.shape == y_true.shape, "y_pred and y_true must have the same shape"
    n = y_pred.size
    yp = y_pred.reshape(-1)
    yt = y_true.reshape(-1)

    # Zero-pad the tail only for ragged sizes (zeros in both inputs -> zero loss,
    # so no masking needed for these elements).
    # TODO(synk): for ragged sizes this pad is one extra HBM pass; a fully
    # in-kernel element mask would require 1-D blocks.
    pad = (-n) % (_SUBLANE * _LANE)
    if pad:
        yp = jnp.pad(yp, (0, pad))
        yt = jnp.pad(yt, (0, pad))
    rows = (n + pad) // _LANE  # always a multiple of 8

    yp2 = yp.reshape(rows, _LANE)
    yt2 = yt.reshape(rows, _LANE)

    block_rows = max(_SUBLANE, (min(int(max_block_rows), rows) // _SUBLANE) * _SUBLANE)
    num_blocks = pl.cdiv(rows, block_rows)
    apply_mask = (num_blocks * block_rows) != rows  # ragged last block?

    kernel = functools.partial(
        _huber_partial_kernel,
        clip_delta=float(clip_delta),
        valid_rows=rows,
        apply_mask=apply_mask,
    )

    partials = pl.pallas_call(
        kernel,
        out_shape=jax.ShapeDtypeStruct((num_blocks, _SUBLANE, _LANE), jnp.float32),
        grid_spec=pltpu.PrefetchScalarGridSpec(
            num_scalar_prefetch=0,
            grid=(num_blocks,),
            in_specs=[
                pl.BlockSpec((block_rows, _LANE), lambda i: (i, 0)),
                pl.BlockSpec((block_rows, _LANE), lambda i: (i, 0)),
            ],
            out_specs=pl.BlockSpec((1, _SUBLANE, _LANE), lambda i: (i, 0, 0)),
        ),
        compiler_params=pltpu.CompilerParams(
            dimension_semantics=("parallel",),
            vmem_limit_bytes=32 * 1024 * 1024,
        ),
    )(yp2, yt2)

    # Tiny final reduction (num_blocks * 8 * 128 f32) + mean normalization.
    return jnp.sum(partials) / jnp.float32(n)


def _huber_ref(y_pred, y_true, clip_delta):
    td = y_true.astype(jnp.float32) - y_pred.astype(jnp.float32)
    a = jnp.abs(td)
    quad = jnp.minimum(a, clip_delta)
    lin = a - quad
    return jnp.mean(0.5 * quad ** 2 + clip_delta * lin)


if __name__ == "__main__":
    key = jax.random.PRNGKey(0)
    k1, k2, k3, k4, k5, k6 = jax.random.split(key, 6)

    clip_delta = 1.0

    # Main test: lane-friendly shape (no wrapper pad, single block, no mask).
    shape = (2, 4, 16, 16)
    y_pred = jax.random.normal(k1, shape, dtype=jnp.float32)
    y_true = jax.random.normal(k2, shape, dtype=jnp.float32) * 2.0
    loss = jax.block_until_ready(huber_loss(y_pred, y_true, clip_delta))
    ref = _huber_ref(y_pred, y_true, clip_delta)
    assert jnp.allclose(loss, ref, rtol=1e-5, atol=1e-6), (loss, ref)

    # Ragged element count: exercises the zero tail-pad path.
    yp_r = jax.random.normal(k3, (3, 5, 7), dtype=jnp.float32)
    yt_r = jax.random.normal(k4, (3, 5, 7), dtype=jnp.float32) * 0.5
    loss_r = jax.block_until_ready(huber_loss(yp_r, yt_r, clip_delta))
    ref_r = _huber_ref(yp_r, yt_r, clip_delta)
    assert jnp.allclose(loss_r, ref_r, rtol=1e-5, atol=1e-6), (loss_r, ref_r)

    # Ragged last block: small block size forces the in-kernel mask path.
    yp_m = jax.random.normal(k5, (3, 1024), dtype=jnp.float32)
    yt_m = jax.random.normal(k6, (3, 1024), dtype=jnp.float32) * 1.5
    loss_m = jax.block_until_ready(huber_loss(yp_m, yt_m, clip_delta, max_block_rows=16))
    ref_m = _huber_ref(yp_m, yt_m, clip_delta)
    assert jnp.allclose(loss_m, ref_m, rtol=1e-5, atol=1e-6), (loss_m, ref_m)

    print("KERNEL_OK")
</pallas_src>

<mosaic_0001>
module attributes {stable_mosaic.version = 11 : i64} {
  func.func @_huber_partial_kernel(%arg0: i32, %arg1: memref<16x128xf32, #tpu.memory_space<vmem>>, %arg2: memref<16x128xf32, #tpu.memory_space<vmem>>, %arg3: memref<1x8x128xf32, #tpu.memory_space<vmem>>) attributes {dimension_semantics = [#tpu.dimension_semantics<parallel>], iteration_bounds = array<i64: 1>, scalar_prefetch = 0 : i64, scratch_operands = 0 : i64, tpu.core_type = #tpu.core_type<tc>, window_params = [{transform_indices = @transform_0, window_bounds = array<i64: 16, 128>}, {transform_indices = @transform_1, window_bounds = array<i64: 16, 128>}, {transform_indices = @transform_2, window_bounds = array<i64: 1, 8, 128>}]} {
    %c0 = arith.constant 0 : index
    %c0_0 = arith.constant 0 : index
    %0 = vector.load %arg1[%c0, %c0_0] : memref<16x128xf32, #tpu.memory_space<vmem>>, vector<16x128xf32>
    %c0_1 = arith.constant 0 : index
    %c0_2 = arith.constant 0 : index
    %1 = vector.load %arg2[%c0_1, %c0_2] : memref<16x128xf32, #tpu.memory_space<vmem>>, vector<16x128xf32>
    %2 = arith.subf %1, %0 : vector<16x128xf32>
    %3 = math.absf %2 : vector<16x128xf32>
    %cst = arith.constant 1.000000e+00 : f32
    %4 = vector.broadcast %cst : f32 to vector<16x128xf32>
    %5 = arith.minimumf %3, %4 : vector<16x128xf32>
    %6 = arith.subf %3, %5 : vector<16x128xf32>
    %cst_3 = arith.constant 5.000000e-01 : f32
    %7 = vector.broadcast %cst_3 : f32 to vector<16x128xf32>
    %8 = arith.mulf %7, %5 : vector<16x128xf32>
    %9 = arith.mulf %8, %5 : vector<16x128xf32>
    %cst_4 = arith.constant 1.000000e+00 : f32
    %10 = vector.broadcast %cst_4 : f32 to vector<16x128xf32>
    %11 = arith.mulf %10, %6 : vector<16x128xf32>
    %12 = arith.addf %9, %11 : vector<16x128xf32>
    %13 = vector.shape_cast %12 : vector<16x128xf32> to vector<2x8x128xf32>
    %cst_5 = arith.constant dense<0.000000e+00> : vector<8x128xf32>
    %14 = vector.multi_reduction <add>, %13, %cst_5 [0] : vector<2x8x128xf32> to vector<8x128xf32>
    %15 = vector.shape_cast %14 : vector<8x128xf32> to vector<1x8x128xf32>
    %c0_6 = arith.constant 0 : index
    %c0_7 = arith.constant 0 : index
    %c0_8 = arith.constant 0 : index
    %16 = vector.load %arg3[%c0_6, %c0_7, %c0_8] : memref<1x8x128xf32, #tpu.memory_space<vmem>>, vector<1x8x128xf32>
    tpu.vector_store %arg3[%c0_6, %c0_7, %c0_8], %15 {strides = array<i32>} : memref<1x8x128xf32, #tpu.memory_space<vmem>>, vector<1x8x128xf32>,
    return
  }
  func.func @transform_0(%arg0: i32) -> (i32, i32) {
    %c0_i32 = arith.constant 0 : i32
    %c0_i32_0 = arith.constant 0 : i32
    return %arg0, %c0_i32 : i32, i32
  }
  func.func @transform_1(%arg0: i32) -> (i32, i32) {
    %c0_i32 = arith.constant 0 : i32
    %c0_i32_0 = arith.constant 0 : i32
    return %arg0, %c0_i32 : i32, i32
  }
  func.func @transform_2(%arg0: i32) -> (i32, i32, i32) {
    %c0_i32 = arith.constant 0 : i32
    %c0_i32_0 = arith.constant 0 : i32
    %c0_i32_1 = arith.constant 0 : i32
    return %arg0, %c0_i32, %c0_i32_0 : i32, i32, i32
  }
}

</mosaic_0001>

<llo_original>
// kernel: tpu_custom_call.1
$region0: #{tpu_custom_call.1}
  #allocation0 [shape = 'u32[]', space=smem, size = 0x4, offset = 0x4, fixed_abs, tag = 'smem constant byte address 0x4 - core index']
  #allocation1 [shape = 'u32[72,128]{1,0:T(1,128)}', space=vmem, size = 0x9000, scoped, tag = 'internal scratch']
  %s0 = inlined_call_operand.hbm [shape: f32[16,128], index: 0, kind: input, shape index: {}]
  %s1 = inlined_call_operand.hbm [shape: f32[16,128], index: 1, kind: input, shape index: {}]
  %s2 = inlined_call_operand.hbm [shape: f32[1,8,128], index: 2, kind: output, shape index: {}]
  %s3 = sld [smem:[#allocation0]]
  $region26: #{tpu_custom_call.1} parent=0
    _
  %s5 = ssub.s32 1, %s3
  %s6 = scalar_select 0, %s5, %s3
  $region1: #{tpu_custom_call.1} parent=0
    #allocation2 [shape = 'u8[8192]{0}', space=vmem, size = 0x2000, scoped, tag = 'input window, operand 0, single buffered']
    #allocation3 [shape = 's32[1]{0}', space=sflag, size = 0x4, scoped, tag = 'scoped memory for tpu_custom_call.1']
    #allocation4 [shape = 's32[1]{0}', space=sflag, size = 0x4, scoped, tag = 'scoped memory for tpu_custom_call.1']
    #allocation5 [shape = 'u8[8192]{0}', space=vmem, size = 0x2000, scoped, tag = 'input window, operand 1, single buffered']
    #allocation6 [shape = 's32[1]{0}', space=sflag, size = 0x4, scoped, tag = 'scoped memory for tpu_custom_call.1']
    #allocation7 [shape = 'u8[4096]{0}', space=vmem, size = 0x1000, scoped, tag = 'output window, operand 0, single buffered']
    %7 = vsyncpa [#allocation3], 0
    %8 = vsyncpa [#allocation6], 0
    %9 = vsyncpa [#allocation4], 0
    // Predicated region
    $region2: #{tpu_custom_call.1} parent=1 // pred_check
      _
    $region3: #{tpu_custom_call.1} parent=1 // pred_check_branch
      %11 = sbr.rel (0) target = $region5
    $region4: #{tpu_custom_call.1} parent=1 // pred_region
      %13 = vsyncadd [#allocation3], 0
      %s14 = sshll.u32 %s0, 4
      %s15 = int_to_ptr.hbm [resolvable:$true] %s14
      %s16 = sshll.u32 [#allocation2], 4
      %s17 = int_to_ptr.vmem [resolvable:$true] %s16
      %22 = dma.hbm_to_vmem [thread:$0]  %s15, 256, %s17, [#allocation3], 128, 128, 8
    $region5: #{tpu_custom_call.1} parent=1 // pred_fallthru
      _
    // Predicated region
    $region6: #{tpu_custom_call.1} parent=1 // pred_check
      _
    $region7: #{tpu_custom_call.1} parent=1 // pred_check_branch
      %24 = sbr.rel (0) target = $region9
    $region8: #{tpu_custom_call.1} parent=1 // pred_region
      %26 = vsyncadd [#allocation6], 0
      %s27 = sshll.u32 %s1, 4
      %s28 = int_to_ptr.hbm [resolvable:$true] %s27
      %s29 = sshll.u32 [#allocation5], 4
      %s30 = int_to_ptr.vmem [resolvable:$true] %s29
      %35 = dma.hbm_to_vmem [thread:$0]  %s28, 256, %s30, [#allocation6], 128, 128, 8
    $region9: #{tpu_custom_call.1} parent=1 // pred_fallthru
      _
    // Predicated region
    $region10: #{tpu_custom_call.1} parent=1 // pred_check
      _
    $region11: #{tpu_custom_call.1} parent=1 // pred_check_branch
      %37 = sbr.rel (0) target = $region13
    $region12: #{tpu_custom_call.1} parent=1 // pred_region
      %39 = dma.done [#allocation3], 256
    $region13: #{tpu_custom_call.1} parent=1 // pred_fallthru
      _
    // Predicated region
    $region14: #{tpu_custom_call.1} parent=1 // pred_check
      _
    $region15: #{tpu_custom_call.1} parent=1 // pred_check_branch
      %41 = sbr.rel (0) target = $region17
    $region16: #{tpu_custom_call.1} parent=1 // pred_region
      %43 = dma.done [#allocation6], 256
    $region17: #{tpu_custom_call.1} parent=1 // pred_fallthru
      _
    %v44 = vld [vmem:[#allocation2] sm:$0xff]
    %v45 = vld [vmem:[#allocation2 + $0x8] sm:$0xff]
    %v46 = vld [vmem:[#allocation5] sm:$0xff]
    %v47 = vld [vmem:[#allocation5 + $0x8] sm:$0xff]
    %v48 = vsub.f32 %v46, %v44
    %v49 = vsub.f32 %v47, %v45
    %v50 = vand.u32 2147483647, %v48
    %v51 = vand.u32 2147483647, %v49
    %v52 = vmin.f32 %v50, 1.0
    %v53 = vmin.f32 %v51, 1.0
    %v54 = vsub.f32 %v50, %v52
    %v55 = vsub.f32 %v51, %v53
    %v56 = vmul.f32 %v52, 0.5
    %v57 = vmul.f32 %v53, 0.5
    %v58 = vmul.f32 %v56, %v52
    %v59 = vmul.f32 %v57, %v53
    %v60 = vadd.f32 %v58, %v54
    %v61 = vadd.f32 %v59, %v55
    %v62 = vadd.f32 %v60, %v61
    %63 = vst [vmem:[#allocation7] sm:$0xff] %v62
    // Predicated region
    $region18: #{tpu_custom_call.1} parent=1 // pred_check
      _
    $region19: #{tpu_custom_call.1} parent=1 // pred_check_branch
      %65 = sbr.rel (0) target = $region21
    $region20: #{tpu_custom_call.1} parent=1 // pred_region
      %67 = vsyncadd [#allocation4], 0
      %s69 = sshll.u32 [#allocation7], 4
      %s70 = int_to_ptr.vmem [resolvable:$true] %s69
      %s71 = sshll.u32 %s2, 4
      %s72 = int_to_ptr.hbm [resolvable:$true] %s71
      %74 = dma.vmem_to_hbm [thread:$0]  %s70, 128, %s72, [#allocation4]
    $region21: #{tpu_custom_call.1} parent=1 // pred_fallthru
      _
    // Predicated region
    $region22: #{tpu_custom_call.1} parent=1 // pred_check
      _
    $region23: #{tpu_custom_call.1} parent=1 // pred_check_branch
      %76 = sbr.rel (0) target = $region25
    $region24: #{tpu_custom_call.1} parent=1 // pred_region
      %78 = dma.done [#allocation4], 128
    $region25: #{tpu_custom_call.1} parent=1 // pred_fallthru
      _
    %79 = vsyncpa [#allocation3], 1
    %80 = vsyncpa [#allocation6], 1
    %81 = vsyncpa [#allocation4], 1

</llo_original>
